<compile_context>
chip_gen: v7x
topology: tpu7x:2x2x1
jax: 0.10.0
libtpu: 0.0.40
codegen_flags: <defaults>
</compile_context>

<pallas_src>
import functools

import jax
import jax.numpy as jnp
from jax.experimental import pallas as pl
from jax.experimental.pallas import tpu as pltpu


def _round_up(x: int, m: int) -> int:
    return (x + m - 1) // m * m


def _vmem_capacity_bytes() -> int:
    """Physical VMEM of the attached TPU; falls back to 128 MiB (v5e/v6e-class)."""
    try:
        cap = int(getattr(pltpu.get_tpu_info(), "vmem_capacity_bytes", 0))
        if cap > 0:
            return cap
    except Exception:
        pass
    return 128 << 20


def _pick_tile_m(M: int, Kp: int, Dp: int, csize: int, osize: int,
                 budget: int, fixed_bytes: int) -> int:
    """Largest sublane-friendly row tile that fits the VMEM budget; prefers exact divisors
    of M so the output needs no padding (free post-kernel reshape)."""
    per_row = 2 * Kp * csize + 2 * Dp * osize          # double-buffered x tile + out tile
    max_rows = max(16, (budget - fixed_bytes) // per_row)
    # v7x (64 MiB VMEM, 2 TCs): cap at 1024 so the grid keeps several steps for megacore.
    # v5e/v6e (128 MiB): allow up to 2048.
    hard_cap = 2048 if budget >= (72 << 20) else 1024
    candidates = (2048, 1024, 512, 256, 128, 64, 32, 16)
    for t in candidates:                               # exact divisor of M -> no row padding
        if t <= max_rows and t <= hard_cap and M % t == 0:
            return t
    cap = min(max_rows, hard_cap, _round_up(M, 16))    # fallback: pad M up to a multiple
    for t in candidates:
        if t <= cap:
            return t
    return 16


def _patch_embed_kernel(x_ref, w_ref, b_ref, o_ref):
    # x_ref: (tile_m, Kp)  patch rows, compute dtype (bf16 by default), lane-dense padded K
    # w_ref: (Kp, Dp)      full projection weight (grid-invariant -> DMA'd once)
    # b_ref: (1, Dp)       bias (f32, grid-invariant)
    # o_ref: (tile_m, Dp)
    acc = jnp.dot(x_ref[...], w_ref[...], preferred_element_type=jnp.float32)
    o_ref[...] = (acc + b_ref[...]).astype(o_ref.dtype)


@functools.partial(jax.jit,
                   static_argnames=("patch_size", "compute_dtype", "out_dtype"))
def img_linear_backbone(x, weight, bias, patch_size,
                        compute_dtype=jnp.bfloat16, out_dtype=None):
    """x: (B, C, H, W); weight: (d_model, C, p, p); bias: (d_model,)
    returns (B, (H//p)*(W//p), d_model) — identical semantics to the PyTorch forward."""
    B, C, H, W = x.shape
    d_model = weight.shape[0]
    p = patch_size
    Hp, Wp = H // p, W // p
    N = Hp * Wp
    K = C * p * p
    M = B * N
    out_dtype = x.dtype if out_dtype is None else out_dtype

    # Lane-dense padded dims. d_model is already a multiple of 128 for real ViT configs,
    # in which case Dp == d_model and the result needs no column slice. Zero-padded K rows /
    # d_model columns contribute exactly zero and are sliced off afterwards.
    Kp = _round_up(K, 128)
    Dp = _round_up(d_model, 128)

    csize = jnp.dtype(compute_dtype).itemsize
    osize = jnp.dtype(out_dtype).itemsize

    # Generation-aware VMEM budget: ~48 MiB on v7x (64 MiB physical), ~96 MiB on v5e/v6e.
    budget = (3 * _vmem_capacity_bytes()) // 4
    fixed_bytes = 2 * Kp * Dp * csize + 2 * Dp * 4      # weight + bias (double-buffered)
    tile_m = _pick_tile_m(M, Kp, Dp, csize, osize, budget, fixed_bytes)
    Mp = _round_up(M, tile_m)

    vmem_limit = int(min(
        budget,
        max(16 << 20,
            fixed_bytes + tile_m * (2 * Kp * csize + 2 * Dp * osize) + (4 << 20))))

    # im2col (non-overlapping patches), flatten order (C, kh, kw) matching the conv weight
    # layout (d_model, C, p, p). Cast first so the materialized intermediate is half-width.
    patches = x.astype(compute_dtype).reshape(B, C, Hp, p, Wp, p)
    patches = patches.transpose(0, 2, 4, 1, 3, 5).reshape(M, K)
    patches_p = jnp.pad(patches, ((0, Mp - M), (0, Kp - K)))

    w_t = jnp.pad(weight.reshape(d_model, K).T,
                  ((0, Kp - K), (0, Dp - d_model))).astype(compute_dtype)
    b2d = jnp.pad(bias.astype(jnp.float32), (0, Dp - d_model)).reshape(1, Dp)

    out = pl.pallas_call(
        _patch_embed_kernel,
        out_shape=jax.ShapeDtypeStruct((Mp, Dp), out_dtype),
        grid=(Mp // tile_m,),
        in_specs=[
            pl.BlockSpec((tile_m, Kp), lambda i: (i, 0)),   # patch rows (streamed)
            pl.BlockSpec((Kp, Dp), lambda i: (0, 0)),       # weight (VMEM-resident)
            pl.BlockSpec((1, Dp), lambda i: (0, 0)),        # bias   (VMEM-resident)
        ],
        out_specs=pl.BlockSpec((tile_m, Dp), lambda i: (i, 0)),
        compiler_params=pltpu.CompilerParams(
            dimension_semantics=("parallel",),
            vmem_limit_bytes=vmem_limit,
        ),
    )(patches_p, w_t, b2d)

    if Mp == M and Dp == d_model:
        return out.reshape(B, N, d_model)                   # free metadata op
    return out[:M, :d_model].reshape(B, N, d_model)


def _reference(x, weight, bias, patch_size):
    # pure-JAX reference: conv (stride == kernel) -> flatten(-2) -> transpose(1, 2)
    y = jax.lax.conv_general_dilated(
        x, weight,
        window_strides=(patch_size, patch_size),
        padding="VALID",
        dimension_numbers=("NCHW", "OIHW", "NCHW"),
    )
    y = y + bias.reshape(1, -1, 1, 1)
    B, D, Hp, Wp = y.shape
    return y.reshape(B, D, Hp * Wp).transpose(0, 2, 1)


if __name__ == "__main__":
    # small shapes consistent with the module: in_chan=3 (nn.Conv2d default here),
    # d_model=32, patch_size=4, 16x16 images, batch 2
    B, C, H, W = 2, 3, 16, 16
    d_model, patch_size = 32, 4

    key = jax.random.PRNGKey(0)
    kx, kw, kb = jax.random.split(key, 3)

    x = jax.random.normal(kx, (B, C, H, W), dtype=jnp.float32)
    weight = 0.05 * jax.random.normal(
        kw, (d_model, C, patch_size, patch_size), dtype=jnp.float32)
    bias = 0.01 * jax.random.normal(kb, (d_model,), dtype=jnp.float32)

    out = img_linear_backbone(x, weight, bias, patch_size=patch_size)
    out = jax.block_until_ready(out)

    ref = _reference(x, weight, bias, patch_size)
    assert out.shape == (B, (H // patch_size) * (W // patch_size), d_model)
    # bf16 inputs + f32 accumulation -> loose-ish tolerance
    assert jnp.allclose(out, ref, atol=2e-2, rtol=2e-2), float(
        jnp.max(jnp.abs(out - ref)))

    print("KERNEL_OK")
</pallas_src>

<mosaic_0001>
module attributes {stable_mosaic.version = 11 : i64} {
  func.func @_patch_embed_kernel(%arg0: i32, %arg1: memref<32x128xbf16, #tpu.memory_space<vmem>>, %arg2: memref<128x128xbf16, #tpu.memory_space<vmem>>, %arg3: memref<1x128xf32, #tpu.memory_space<vmem>>, %arg4: memref<32x128xf32, #tpu.memory_space<vmem>>) attributes {dimension_semantics = [#tpu.dimension_semantics<parallel>], iteration_bounds = array<i64: 1>, scalar_prefetch = 0 : i64, scratch_operands = 0 : i64, tpu.core_type = #tpu.core_type<tc>, window_params = [{transform_indices = @transform_0, window_bounds = array<i64: 32, 128>}, {pipeline_mode = #tpu.pipeline_mode<synchronous>, transform_indices = @transform_1, window_bounds = array<i64: 128, 128>}, {pipeline_mode = #tpu.pipeline_mode<synchronous>, transform_indices = @transform_2, window_bounds = array<i64: 1, 128>}, {transform_indices = @transform_3, window_bounds = array<i64: 32, 128>}]} {
    %c0 = arith.constant 0 : index
    %c0_0 = arith.constant 0 : index
    %0 = vector.load %arg1[%c0, %c0_0] : memref<32x128xbf16, #tpu.memory_space<vmem>>, vector<32x128xbf16>
    %c0_1 = arith.constant 0 : index
    %c0_2 = arith.constant 0 : index
    %1 = vector.load %arg2[%c0_1, %c0_2] : memref<128x128xbf16, #tpu.memory_space<vmem>>, vector<128x128xbf16>
    %cst = arith.constant dense<0.000000e+00> : vector<32x128xf32>
    %2 = tpu.matmul %0, %1, %cst {dimension_numbers = #tpu.dot_dimension_numbers<[1], [0], [0], [1], [0, 0, 1, 1], [], []>} : vector<32x128xbf16>, vector<128x128xbf16>, vector<32x128xf32> -> vector<32x128xf32>
    %c0_3 = arith.constant 0 : index
    %c0_4 = arith.constant 0 : index
    %3 = vector.load %arg3[%c0_3, %c0_4] : memref<1x128xf32, #tpu.memory_space<vmem>>, vector<1x128xf32>
    %4 = vector.broadcast %3 : vector<1x128xf32> to vector<32x128xf32>
    %5 = arith.addf %2, %4 : vector<32x128xf32>
    %c0_5 = arith.constant 0 : index
    %c0_6 = arith.constant 0 : index
    %6 = vector.load %arg4[%c0_5, %c0_6] : memref<32x128xf32, #tpu.memory_space<vmem>>, vector<32x128xf32>
    tpu.vector_store %arg4[%c0_5, %c0_6], %5 {strides = array<i32>} : memref<32x128xf32, #tpu.memory_space<vmem>>, vector<32x128xf32>,
    return
  }
  func.func @transform_0(%arg0: i32) -> (i32, i32) {
    %c0_i32 = arith.constant 0 : i32
    %c0_i32_0 = arith.constant 0 : i32
    return %arg0, %c0_i32 : i32, i32
  }
  func.func @transform_1(%arg0: i32) -> (i32, i32) {
    %c0_i32 = arith.constant 0 : i32
    %c0_i32_0 = arith.constant 0 : i32
    %c0_i32_1 = arith.constant 0 : i32
    return %c0_i32, %c0_i32_0 : i32, i32
  }
  func.func @transform_2(%arg0: i32) -> (i32, i32) {
    %c0_i32 = arith.constant 0 : i32
    %c0_i32_0 = arith.constant 0 : i32
    %c0_i32_1 = arith.constant 0 : i32
    return %c0_i32, %c0_i32_0 : i32, i32
  }
  func.func @transform_3(%arg0: i32) -> (i32, i32) {
    %c0_i32 = arith.constant 0 : i32
    %c0_i32_0 = arith.constant 0 : i32
    return %arg0, %c0_i32 : i32, i32
  }
}

</mosaic_0001>

<llo_original>
// kernel: img_linear_backbone.1
$region0: #{img_linear_backbone.1}
  #allocation0 [shape = 'u32[]', space=smem, size = 0x4, offset = 0x4, fixed_abs, tag = 'smem constant byte address 0x4 - core index']
  #allocation1 [shape = 'u32[144,128]{1,0:T(1,128)}', space=vmem, size = 0x12000, scoped, tag = 'internal scratch']
  %s0 = inlined_call_operand.vmem [shape: bf16[32,128], index: 0, kind: input, shape index: {}]
  %s1 = inlined_call_operand.vmem [shape: bf16[128,128], index: 1, kind: input, shape index: {}]
  %s2 = inlined_call_operand.vmem [shape: f32[1,128], index: 2, kind: input, shape index: {}]
  %s3 = inlined_call_operand.hbm [shape: f32[32,128], index: 3, kind: output, shape index: {}]
  %s4 = sld [smem:[#allocation0]]
  $region22: #{img_linear_backbone.1} parent=0
    _
  %s6 = ssub.s32 1, %s4
  %s7 = scalar_select 0, %s6, %s4
  $region1: #{img_linear_backbone.1} parent=0
    #allocation2 [shape = 'u8[16384]{0}', space=vmem, size = 0x4000, scoped, tag = 'output window, operand 0, single buffered']
    #allocation3 [shape = 's32[1]{0}', space=sflag, size = 0x4, scoped, tag = 'scoped memory for img_linear_backbone.1']
    %8 = vsyncpa [#allocation3], 0
    // Predicated region
    $region2: #{img_linear_backbone.1} parent=1 // pred_check
      _
    $region3: #{img_linear_backbone.1} parent=1 // pred_check_branch
      %10 = sbr.rel (0) target = $region5
    $region4: #{img_linear_backbone.1} parent=1 // pred_region
      _
    $region5: #{img_linear_backbone.1} parent=1 // pred_fallthru
      _
    // Predicated region
    $region6: #{img_linear_backbone.1} parent=1 // pred_check
      _
    $region7: #{img_linear_backbone.1} parent=1 // pred_check_branch
      %12 = sbr.rel (0) target = $region9
    $region8: #{img_linear_backbone.1} parent=1 // pred_region
      _
    $region9: #{img_linear_backbone.1} parent=1 // pred_fallthru
      _
    // Predicated region
    $region10: #{img_linear_backbone.1} parent=1 // pred_check
      _
    $region11: #{img_linear_backbone.1} parent=1 // pred_check_branch
      %14 = sbr.rel (0) target = $region13
    $region12: #{img_linear_backbone.1} parent=1 // pred_region
      _
    $region13: #{img_linear_backbone.1} parent=1 // pred_fallthru
      _
    %v16 = vld [vmem:[%s0] sm:$0xf]
    %v17 = vld [vmem:[%s0 + $0x4] sm:$0xf]
    %v18 = vld [vmem:[%s0 + $0x8] sm:$0xf]
    %v19 = vld [vmem:[%s0 + $0xc] sm:$0xf]
    %v20 = vld [vmem:[%s1] sm:$0xf]
    %v21 = vld [vmem:[%s1 + $0x4] sm:$0xf]
    %v22 = vld [vmem:[%s1 + $0x8] sm:$0xf]
    %v23 = vld [vmem:[%s1 + $0xc] sm:$0xf]
    %v24 = vld [vmem:[%s1 + $0x10] sm:$0xf]
    %v25 = vld [vmem:[%s1 + $0x14] sm:$0xf]
    %v26 = vld [vmem:[%s1 + $0x18] sm:$0xf]
    %v27 = vld [vmem:[%s1 + $0x1c] sm:$0xf]
    %v28 = vld [vmem:[%s1 + $0x20] sm:$0xf]
    %v29 = vld [vmem:[%s1 + $0x24] sm:$0xf]
    %v30 = vld [vmem:[%s1 + $0x28] sm:$0xf]
    %v31 = vld [vmem:[%s1 + $0x2c] sm:$0xf]
    %v32 = vld [vmem:[%s1 + $0x30] sm:$0xf]
    %v33 = vld [vmem:[%s1 + $0x34] sm:$0xf]
    %v34 = vld [vmem:[%s1 + $0x38] sm:$0xf]
    %v35 = vld [vmem:[%s1 + $0x3c] sm:$0xf]
    %v36 = vld [vmem:[%s2] sm:$0x1]
    %v38 = vlaneseq
    %v39 = vshrl.u32 %v38, 7
    %v40 = vsub.s32 0, %v39
    %v41 = vrot.slane %v36, %v40
    %v47 = vunpack.c.l.b16 %v16
    %v48 = vunpack.c.l.b16 %v17
    %v49 = vunpack.c.l.b16 %v18
    %v50 = vunpack.c.l.b16 %v19
    %v51 = vpack.c.b16 %v48, %v47
    %v52 = vpack.c.b16 %v50, %v49
    %v71 = vunpack.c.l.b16 %v20
    %v72 = vunpack.c.l.b16 %v21
    %v73 = vunpack.c.l.b16 %v22
    %v74 = vunpack.c.l.b16 %v23
    %v75 = vunpack.c.l.b16 %v24
    %v76 = vunpack.c.l.b16 %v25
    %v77 = vunpack.c.l.b16 %v26
    %v78 = vunpack.c.l.b16 %v27
    %v79 = vunpack.c.l.b16 %v28
    %v80 = vunpack.c.l.b16 %v29
    %v81 = vunpack.c.l.b16 %v30
    %v82 = vunpack.c.l.b16 %v31
    %v83 = vunpack.c.l.b16 %v32
    %v84 = vunpack.c.l.b16 %v33
    %v85 = vunpack.c.l.b16 %v34
    %v86 = vunpack.c.l.b16 %v35
    %v87 = vpack.c.b16 %v72, %v71
    %v88 = vpack.c.b16 %v74, %v73
    %v89 = vpack.c.b16 %v76, %v75
    %v90 = vpack.c.b16 %v78, %v77
    %v91 = vpack.c.b16 %v80, %v79
    %v92 = vpack.c.b16 %v82, %v81
    %v93 = vpack.c.b16 %v84, %v83
    %v94 = vpack.c.b16 %v86, %v85
    %103 = vmatprep.subr.bf16.mxu0 0
    %104 = vmatpush1.bf16.msra.mxu0 %v87
    %105 = vmatprep.subr.bf16.mxu0 0
    %106 = vmatpush1.bf16.msra.mxu0 %v88
    %107 = vmatprep.subr.bf16.mxu0 0
    %108 = vmatpush1.bf16.msra.mxu0 %v89
    %109 = vmatprep.subr.bf16.mxu0 0
    %110 = vmatpush1.bf16.msra.mxu0 %v90
    %111 = vmatprep.subr.bf16.mxu0 0
    %112 = vmatpush1.bf16.msra.mxu0 %v91
    %113 = vmatprep.subr.bf16.mxu0 0
    %114 = vmatpush1.bf16.msra.mxu0 %v92
    %115 = vmatprep.subr.bf16.mxu0 0
    %116 = vmatpush1.bf16.msra.mxu0 %v93
    %117 = vmatprep.subr.bf16.mxu0 0
    %118 = vmatpush1.bf16.msra.mxu0 %v94
    %119 = vmatprep.subr.bf16.mxu0 0
    %120 = vmatpush1.bf16.msra.mxu0 0
    %121 = vmatprep.subr.bf16.mxu0 0
    %122 = vmatpush1.bf16.msra.mxu0 0
    %123 = vmatprep.subr.bf16.mxu0 0
    %124 = vmatpush1.bf16.msra.mxu0 0
    %125 = vmatprep.subr.bf16.mxu0 0
    %126 = vmatpush1.bf16.msra.mxu0 0
    %127 = vmatprep.subr.bf16.mxu0 0
    %128 = vmatpush1.bf16.msra.mxu0 0
    %129 = vmatprep.subr.bf16.mxu0 0
    %130 = vmatpush1.bf16.msra.mxu0 0
    %131 = vmatprep.subr.bf16.mxu0 0
    %132 = vmatpush1.bf16.msra.mxu0 0
    %133 = vmatprep.subr.bf16.mxu0 0
    %134 = vmatpush1.bf16.msra.mxu0 0
    %135 = vmatprep.mubr.bf16.mxu0 0
    %136 = vmatmul.mubr.bf16.gmra.mrb[0].mxu0 %v51
    %v137 = vpop.f32.mrb[0].mxu0
    %v138 = vadd.f32 %v41, %v137
    %v139 = vpop.f32.mrb[0].mxu0
    %v140 = vpop.f32.mrb[0].mxu0
    %v141 = vadd.f32 %v41, %v140
    %v142 = vpop.f32.mrb[0].mxu0
    %143 = vmatprep.mubr.bf16.mxu0 0
    %144 = vmatmul.mubr.bf16.gmra.mrb[0].mxu0 %v52
    %v145 = vpop.f32.mrb[0].mxu0
    %v146 = vadd.f32 %v41, %v145
    %v147 = vpop.f32.mrb[0].mxu0
    %v148 = vpop.f32.mrb[0].mxu0
    %v149 = vadd.f32 %v41, %v148
    %v150 = vpop.f32.mrb[0].mxu0
    %151 = vdwg.mxu0
    %152 = vst [vmem:[#allocation2] sm:$0xff] %v138
    %153 = vst [vmem:[#allocation2 + $0x8] sm:$0xff] %v141
    %154 = vst [vmem:[#allocation2 + $0x10] sm:$0xff] %v146
    %155 = vst [vmem:[#allocation2 + $0x18] sm:$0xff] %v149
    // Predicated region
    $region14: #{img_linear_backbone.1} parent=1 // pred_check
      _
    $region15: #{img_linear_backbone.1} parent=1 // pred_check_branch
      %157 = sbr.rel (0) target = $region17
    $region16: #{img_linear_backbone.1} parent=1 // pred_region
      %s159 = ssub.s32 512, 512
      %160 = vsyncadd [#allocation3], %s159
      %s161 = sshll.u32 [#allocation2], 4
      %s162 = int_to_ptr.vmem [resolvable:$true] %s161
      %167 = dma.vmem_to_hbm [thread:$0]  %s162, 512, %s3, [#allocation3], 128, 128, 8
    $region17: #{img_linear_backbone.1} parent=1 // pred_fallthru
      _
    // Predicated region
    $region18: #{img_linear_backbone.1} parent=1 // pred_check
      _
    $region19: #{img_linear_backbone.1} parent=1 // pred_check_branch
      %169 = sbr.rel (0) target = $region21
    $region20: #{img_linear_backbone.1} parent=1 // pred_region
      %170 = dma.done [#allocation3], 512
    $region21: #{img_linear_backbone.1} parent=1 // pred_fallthru
      _
    %171 = vsyncpa [#allocation3], 1

</llo_original>
